<compile_context>
chip_gen: v5e
topology: v5e:2x2
jax: 0.10.0
libtpu: 0.0.40
codegen_flags: <defaults>
</compile_context>

<pallas_src>
import functools
import math

import numpy as np
import jax
import jax.numpy as jnp
from jax.experimental import pallas as pl
from jax.experimental.pallas import tpu as pltpu


# ----------------------------- parameter init (matches the PyTorch module) -----------------------------
def init_comb_net_params(key, ninputs, fmaps, L):
    """CombFilter taps: tap0 ~ U(0,1), tap1 = 1.  Linear: U(-1/sqrt(fmaps), 1/sqrt(fmaps))."""
    n_f = len(L)
    assert fmaps % n_f == 0, "fmaps must be divisible by len(L)"
    fmaps_per = fmaps // n_f
    keys = jax.random.split(key, n_f + 1)
    comb_weights = []
    for j in range(n_f):
        w0 = jax.random.uniform(keys[j], (fmaps_per, ninputs), dtype=jnp.float32)  # torch.rand
        w1 = jnp.ones((fmaps_per, ninputs), dtype=jnp.float32)                     # ones
        comb_weights.append(jnp.stack([w0, w1], axis=-1))                          # (fmaps_per, C_in, 2)
    bound = 1.0 / math.sqrt(fmaps)
    w_lin = jax.random.uniform(keys[-1], (1, fmaps), minval=-bound, maxval=bound,
                               dtype=jnp.float32)
    return comb_weights, w_lin


# ----------------------------- weight folding (parameter-only preprocessing) -----------------------------
def build_fir_taps(comb_weights, w_lin, ninputs, L):
    """Fold the Conv1d comb weights and the bias-free Linear head into FIR taps.

    Returns v of shape (1 + len(L), ninputs):
      v[0, i]     = sum_j sum_o w_lin[0, j*fp+o] * w_j[o, i, 1]   (delay 0)
      v[1 + j, i] = sum_o   w_lin[0, j*fp+o] * w_j[o, i, 0]       (delay L[j])
    so   y[b, t] = sum_{s, i} v[s, i] * x[b, i, t - shift_s],  shifts = (0, *L).
    """
    n_f = len(L)
    fmaps_per = comb_weights[0].shape[0]
    fmaps = fmaps_per * n_f
    n_shifts = n_f + 1
    M = np.zeros((fmaps, n_shifts * ninputs), dtype=np.float32)
    for j, w in enumerate(comb_weights):
        w = np.asarray(w)                                            # (fmaps_per, C_in, 2)
        rows = slice(j * fmaps_per, (j + 1) * fmaps_per)
        M[rows, 0:ninputs] = w[:, :, 1]                              # delay-0 tap
        M[rows, (1 + j) * ninputs:(2 + j) * ninputs] = w[:, :, 0]    # delay-L[j] tap
    v = np.asarray(w_lin, dtype=np.float32) @ M                      # (1, n_shifts * ninputs)
    return jnp.asarray(v.reshape(n_shifts, ninputs))


# ----------------------------- Pallas kernel -----------------------------
def _comb_fir_kernel(xm_ref, xh_ref, v_ref, o_ref, *, shifts, halo, t_tile):
    # xm_ref: (1, C_in, t_tile)    current time tile of x
    # xh_ref: (1, C_in, halo)      the `halo` samples immediately left of the tile
    # v_ref:  (n_shifts, C_in)     folded FIR taps
    # o_ref:  (1, 1, t_tile)       output tile (lane dense)
    xm = xm_ref[0]                                   # (C_in, t_tile)
    xh = xh_ref[0]                                   # (C_in, halo)
    xw = jnp.concatenate([xh, xm], axis=-1)          # (C_in, halo + t_tile)
    v = v_ref[...]

    acc = jnp.zeros((1, t_tile), dtype=jnp.float32)
    for s_idx, s in enumerate(shifts):
        # static lane slice holding x[b, :, t0 + k - s] for k in [0, t_tile)
        win = xm if s == 0 else xw[:, halo - s:halo - s + t_tile]
        acc = acc + jnp.dot(v[s_idx:s_idx + 1, :], win,
                            preferred_element_type=jnp.float32)
    o_ref[0] = acc.astype(o_ref.dtype)


def comb_net_pallas(x, v_taps, L, t_tile=2048):
    """x: (B, C_in, T) f32; v_taps: (1 + len(L), C_in) f32 -> (B, 1, T) f32."""
    B, C_in, T = x.shape
    n_shifts = v_taps.shape[0]
    assert v_taps.shape == (len(L) + 1, C_in)
    shifts = (0,) + tuple(int(l) for l in L)
    maxl = max(shifts)

    def round_up(a, m):
        return -(-a // m) * m

    # Halo = max delay rounded up to a lane multiple so the [halo | main] window keeps
    # the main block vreg-aligned; t_tile is a lane-dense multiple of the halo (so the
    # halo block index is integral) and shrinks for short inputs.
    halo = round_up(max(maxl, 1), 128)
    t_tile = round_up(max(int(t_tile), halo), halo)
    t_tile = min(t_tile, round_up(T, halo))
    T_pad = round_up(T, t_tile)
    n_t = T_pad // t_tile
    halo_blocks = t_tile // halo

    # Left-pad by one whole tile (causal zeros; keeps every block offset a multiple of
    # its block size) and right-pad to whole tiles (extra outputs sliced off).
    x_p = jnp.pad(x, ((0, 0), (0, 0), (t_tile, T_pad - T)))

    kernel = functools.partial(_comb_fir_kernel, shifts=shifts, halo=halo, t_tile=t_tile)

    # Per-step VMEM: 2 * (C_in*t_tile + C_in*halo + t_tile) * 4 B  (~100 KiB at
    # t_tile=2048) -- far below every chip's scoped VMEM default, so no
    # vmem_limit_bytes override (the previous 32 MiB cap is gone).
    out = pl.pallas_call(
        kernel,
        out_shape=jax.ShapeDtypeStruct((B, 1, T_pad), jnp.float32),
        grid_spec=pltpu.PrefetchScalarGridSpec(
            num_scalar_prefetch=0,
            grid=(n_t, B),   # large time axis first -> available for megacore sharding
            in_specs=[
                # main tile: x[b, :, t*t_tile : (t+1)*t_tile]
                pl.BlockSpec((1, C_in, t_tile), lambda t, b: (b, 0, t + 1)),
                # halo: x[b, :, t*t_tile - halo : t*t_tile]  (same array, halo-sized blocks)
                pl.BlockSpec((1, C_in, halo),
                             lambda t, b: (b, 0, (t + 1) * halo_blocks - 1)),
                # folded FIR taps: constant index map -> fetched once
                pl.BlockSpec((n_shifts, C_in), lambda t, b: (0, 0)),
            ],
            out_specs=pl.BlockSpec((1, 1, t_tile), lambda t, b: (b, 0, t)),
        ),
        compiler_params=pltpu.CompilerParams(
            dimension_semantics=("parallel", "parallel"),
        ),
    )(x_p, x_p, v_taps)
    return out[:, :, :T]


def post_processing_comb_net_forward(x, comb_weights, w_lin, L, t_tile=2048):
    """Full forward of PostProcessingCombNet using the fused Pallas FIR kernel."""
    v_taps = build_fir_taps(comb_weights, w_lin, x.shape[1], L)
    return comb_net_pallas(x, v_taps, L, t_tile=t_tile)


# ----------------------------- pure-JAX reference (mirrors the PyTorch module) -----------------------------
def comb_net_reference(x, comb_weights, w_lin, L):
    hs = []
    for w, l in zip(comb_weights, L):
        x_pd = jnp.pad(x, ((0, 0), (0, 0), (l, 0)))
        h = jax.lax.conv_general_dilated(
            x_pd, w, window_strides=(1,), padding="VALID",
            rhs_dilation=(l,), dimension_numbers=("NCH", "OIH", "NCH"))
        hs.append(h)
    hs = jnp.concatenate(hs, axis=1)                      # (B, fmaps, T)
    return jnp.einsum("of,bft->bot", w_lin, hs)           # (B, 1, T)


# ----------------------------- main -----------------------------
if __name__ == "__main__":
    B, C_in, T = 2, 4, 1024
    fmaps = 16
    L = [4, 8, 16, 32]

    key = jax.random.PRNGKey(0)
    kx, kp = jax.random.split(key)
    x = jax.random.normal(kx, (B, C_in, T), dtype=jnp.float32)
    comb_weights, w_lin = init_comb_net_params(kp, C_in, fmaps, L)

    ref = comb_net_reference(x, comb_weights, w_lin, L)

    # Small tile -> 4 time tiles per batch row: exercises the cross-tile halo path.
    out = post_processing_comb_net_forward(x, comb_weights, w_lin, L, t_tile=256)
    out = jax.block_until_ready(out)
    assert out.shape == (B, 1, T)
    np.testing.assert_allclose(np.asarray(out), np.asarray(ref), rtol=1e-3, atol=1e-3)

    # Default tile size (auto-shrunk to T) also compiles and matches.
    out2 = post_processing_comb_net_forward(x, comb_weights, w_lin, L)
    out2 = jax.block_until_ready(out2)
    np.testing.assert_allclose(np.asarray(out2), np.asarray(ref), rtol=1e-3, atol=1e-3)

    print("KERNEL_OK")
</pallas_src>

<mosaic_0001>
module attributes {stable_mosaic.version = 11 : i64} {
  func.func @_comb_fir_kernel(%arg0: i32, %arg1: i32, %arg2: memref<1x4x256xf32, #tpu.memory_space<vmem>>, %arg3: memref<1x4x128xf32, #tpu.memory_space<vmem>>, %arg4: memref<5x4xf32, #tpu.memory_space<vmem>>, %arg5: memref<1x1x256xf32, #tpu.memory_space<vmem>>) attributes {dimension_semantics = [#tpu.dimension_semantics<parallel>, #tpu.dimension_semantics<parallel>], iteration_bounds = array<i64: 4, 2>, scalar_prefetch = 0 : i64, scratch_operands = 0 : i64, tpu.core_type = #tpu.core_type<tc>, window_params = [{transform_indices = @transform_0, window_bounds = array<i64: 1, 4, 256>}, {transform_indices = @transform_1, window_bounds = array<i64: 1, 4, 128>}, {pipeline_mode = #tpu.pipeline_mode<synchronous>, transform_indices = @transform_2, window_bounds = array<i64: 5, 4>}, {transform_indices = @transform_3, window_bounds = array<i64: 1, 1, 256>}]} {
    %c0 = arith.constant 0 : index
    %c0_0 = arith.constant 0 : index
    %c0_1 = arith.constant 0 : index
    %0 = vector.load %arg2[%c0, %c0_0, %c0_1] : memref<1x4x256xf32, #tpu.memory_space<vmem>>, vector<1x4x256xf32>
    %1 = vector.shape_cast %0 : vector<1x4x256xf32> to vector<4x256xf32>
    %c0_2 = arith.constant 0 : index
    %c0_3 = arith.constant 0 : index
    %c0_4 = arith.constant 0 : index
    %2 = vector.load %arg3[%c0_2, %c0_3, %c0_4] : memref<1x4x128xf32, #tpu.memory_space<vmem>>, vector<1x4x128xf32>
    %3 = vector.shape_cast %2 : vector<1x4x128xf32> to vector<4x128xf32>
    %4 = tpu.concatenate %3, %1 in 1 : vector<4x128xf32>, vector<4x256xf32> -> vector<4x384xf32>
    %c0_5 = arith.constant 0 : index
    %c0_6 = arith.constant 0 : index
    %5 = vector.load %arg4[%c0_5, %c0_6] : memref<5x4xf32, #tpu.memory_space<vmem>>, vector<5x4xf32>
    %cst = arith.constant 0.000000e+00 : f32
    %6 = vector.broadcast %cst : f32 to vector<1x256xf32>
    %7 = vector.extract_strided_slice %5 {offsets = [0, 0], sizes = [1, 4], strides = [1, 1]} : vector<5x4xf32> to vector<1x4xf32>
    %cst_7 = arith.constant dense<0.000000e+00> : vector<1x256xf32>
    %8 = tpu.matmul %7, %1, %cst_7 {dimension_numbers = #tpu.dot_dimension_numbers<[1], [0], [0], [1], [0, 0, 1, 1], [], []>} : vector<1x4xf32>, vector<4x256xf32>, vector<1x256xf32> -> vector<1x256xf32>
    %9 = arith.addf %6, %8 : vector<1x256xf32>
    %10 = vector.extract_strided_slice %4 {offsets = [0, 124], sizes = [4, 256], strides = [1, 1]} : vector<4x384xf32> to vector<4x256xf32>
    %11 = vector.extract_strided_slice %5 {offsets = [1, 0], sizes = [1, 4], strides = [1, 1]} : vector<5x4xf32> to vector<1x4xf32>
    %cst_8 = arith.constant dense<0.000000e+00> : vector<1x256xf32>
    %12 = tpu.matmul %11, %10, %cst_8 {dimension_numbers = #tpu.dot_dimension_numbers<[1], [0], [0], [1], [0, 0, 1, 1], [], []>} : vector<1x4xf32>, vector<4x256xf32>, vector<1x256xf32> -> vector<1x256xf32>
    %13 = arith.addf %9, %12 : vector<1x256xf32>
    %14 = vector.extract_strided_slice %4 {offsets = [0, 120], sizes = [4, 256], strides = [1, 1]} : vector<4x384xf32> to vector<4x256xf32>
    %15 = vector.extract_strided_slice %5 {offsets = [2, 0], sizes = [1, 4], strides = [1, 1]} : vector<5x4xf32> to vector<1x4xf32>
    %cst_9 = arith.constant dense<0.000000e+00> : vector<1x256xf32>
    %16 = tpu.matmul %15, %14, %cst_9 {dimension_numbers = #tpu.dot_dimension_numbers<[1], [0], [0], [1], [0, 0, 1, 1], [], []>} : vector<1x4xf32>, vector<4x256xf32>, vector<1x256xf32> -> vector<1x256xf32>
    %17 = arith.addf %13, %16 : vector<1x256xf32>
    %18 = vector.extract_strided_slice %4 {offsets = [0, 112], sizes = [4, 256], strides = [1, 1]} : vector<4x384xf32> to vector<4x256xf32>
    %19 = vector.extract_strided_slice %5 {offsets = [3, 0], sizes = [1, 4], strides = [1, 1]} : vector<5x4xf32> to vector<1x4xf32>
    %cst_10 = arith.constant dense<0.000000e+00> : vector<1x256xf32>
    %20 = tpu.matmul %19, %18, %cst_10 {dimension_numbers = #tpu.dot_dimension_numbers<[1], [0], [0], [1], [0, 0, 1, 1], [], []>} : vector<1x4xf32>, vector<4x256xf32>, vector<1x256xf32> -> vector<1x256xf32>
    %21 = arith.addf %17, %20 : vector<1x256xf32>
    %22 = vector.extract_strided_slice %4 {offsets = [0, 96], sizes = [4, 256], strides = [1, 1]} : vector<4x384xf32> to vector<4x256xf32>
    %23 = vector.extract_strided_slice %5 {offsets = [4, 0], sizes = [1, 4], strides = [1, 1]} : vector<5x4xf32> to vector<1x4xf32>
    %cst_11 = arith.constant dense<0.000000e+00> : vector<1x256xf32>
    %24 = tpu.matmul %23, %22, %cst_11 {dimension_numbers = #tpu.dot_dimension_numbers<[1], [0], [0], [1], [0, 0, 1, 1], [], []>} : vector<1x4xf32>, vector<4x256xf32>, vector<1x256xf32> -> vector<1x256xf32>
    %25 = arith.addf %21, %24 : vector<1x256xf32>
    %c0_12 = arith.constant 0 : index
    %c0_13 = arith.constant 0 : index
    %c0_14 = arith.constant 0 : index
    %26 = vector.load %arg5[%c0_12, %c0_13, %c0_14] : memref<1x1x256xf32, #tpu.memory_space<vmem>>, vector<1x1x256xf32>
    %27 = vector.shape_cast %26 : vector<1x1x256xf32> to vector<1x256xf32>
    %28 = vector.shape_cast %25 : vector<1x256xf32> to vector<1x1x256xf32>
    tpu.vector_store %arg5[%c0_12, %c0_13, %c0_14], %28 {strides = array<i32>} : memref<1x1x256xf32, #tpu.memory_space<vmem>>, vector<1x1x256xf32>,
    return
  }
  func.func @transform_0(%arg0: i32, %arg1: i32) -> (i32, i32, i32) {
    %c1_i32 = arith.constant 1 : i32
    %0 = arith.addi %arg0, %c1_i32 : i32
    %c0_i32 = arith.constant 0 : i32
    %c0_i32_0 = arith.constant 0 : i32
    return %arg1, %c0_i32, %0 : i32, i32, i32
  }
  func.func @transform_1(%arg0: i32, %arg1: i32) -> (i32, i32, i32) {
    %c1_i32 = arith.constant 1 : i32
    %0 = arith.addi %arg0, %c1_i32 : i32
    %c2_i32 = arith.constant 2 : i32
    %1 = arith.muli %0, %c2_i32 : i32
    %c1_i32_0 = arith.constant 1 : i32
    %2 = arith.subi %1, %c1_i32_0 : i32
    %c0_i32 = arith.constant 0 : i32
    %c0_i32_1 = arith.constant 0 : i32
    return %arg1, %c0_i32, %2 : i32, i32, i32
  }
  func.func @transform_2(%arg0: i32, %arg1: i32) -> (i32, i32) {
    %c0_i32 = arith.constant 0 : i32
    %c0_i32_0 = arith.constant 0 : i32
    %c0_i32_1 = arith.constant 0 : i32
    return %c0_i32, %c0_i32_0 : i32, i32
  }
  func.func @transform_3(%arg0: i32, %arg1: i32) -> (i32, i32, i32) {
    %c0_i32 = arith.constant 0 : i32
    %c0_i32_0 = arith.constant 0 : i32
    return %arg1, %c0_i32, %arg0 : i32, i32, i32
  }
}

</mosaic_0001>

<llo_original>
// kernel: tpu_custom_call.1
$region0: #{tpu_custom_call.1}
  #allocation0 [shape = 'u32[]', space=smem, size = 0x4, offset = 0x4, fixed_abs, tag = 'smem constant byte address 0x4 - core index']
  #allocation1 [shape = 'u32[72,128]{1,0:T(1,128)}', space=vmem, size = 0x9000, scoped, tag = 'internal scratch']
  %s0 = inlined_call_operand.hbm [shape: f32[2,4,1280], index: 0, kind: input, shape index: {}]
  %s1 = inlined_call_operand.hbm [shape: f32[2,4,1280], index: 1, kind: input, shape index: {}]
  %s2 = inlined_call_operand.vmem [shape: f32[5,4], index: 2, kind: input, shape index: {}]
  %s3 = inlined_call_operand.hbm [shape: f32[2,1,1024], index: 3, kind: output, shape index: {}]
  %s4 = sld [smem:[#allocation0]]
  $region53: #{tpu_custom_call.1} parent=0
    _
  %s6 = ssub.s32 1, %s4
  %s7 = scalar_select 0, %s6, %s4
  $region1: #{tpu_custom_call.1} parent=0
    #allocation2 [shape = 'u8[8192]{0}', space=vmem, size = 0x2000, scoped, tag = 'input window, operand 0']
    #allocation3 [shape = 's32[2]{0}', space=sflag, size = 0x8, scoped, tag = 'scoped memory for tpu_custom_call.1']
    #allocation4 [shape = 's32[2]{0}', space=sflag, size = 0x8, scoped, tag = 'scoped memory for tpu_custom_call.1']
    #allocation5 [shape = 'u8[4096]{0}', space=vmem, size = 0x1000, scoped, tag = 'input window, operand 1']
    #allocation6 [shape = 's32[2]{0}', space=sflag, size = 0x8, scoped, tag = 'scoped memory for tpu_custom_call.1']
    #allocation7 [shape = 'u8[2048]{0}', space=vmem, size = 0x800, scoped, tag = 'output window, operand 0']
    %8 = vsyncpa [#allocation3], 0
    %s9 = scalar_lea.sflag [#allocation3], 1
    %10 = vsyncpa %s9, 0
    %11 = vsyncpa [#allocation6], 0
    %s12 = scalar_lea.sflag [#allocation6], 1
    %13 = vsyncpa %s12, 0
    %14 = vsyncpa [#allocation4], 0
    %s15 = scalar_lea.sflag [#allocation4], 1
    %16 = vsyncpa %s15, 0
    loop: start=0, step=1, limit=10
    $region2: #{tpu_custom_call.1} parent=1 // loop_pre_header
      _
    $region3: #{tpu_custom_call.1} parent=1 // loop_header
      %s18 = sphi 0, %s22
      %p19 = scmp.ge.s32.totalorder %s18, 10
      %s25 = sphi 0, %s37
      %s26 = sphi 0, %s33
      %s27 = sphi 0, %s25
      %s28 = sphi 0, %s26
      %s29 = sphi 0, %s27
      %s30 = sphi 0, %s28
      %s44 = sphi 0, %s46
      %s47 = sphi 0, %s44
      %s48 = sphi 0, %s47
      %s64 = sphi 0, %s48
      %s78 = sphi 0, %s80
      %s81 = sphi 0, %s78
      %s82 = sphi 0, %s81
      %s98 = sphi 0, %s82
      %s102 = sphi 0, %s102
      %s104 = sphi 0, %s102
      %s105 = sphi 0, %s104
      %s119 = sphi 0, %s105
      %s127 = sphi 0, %s129
      %s130 = sphi 0, %s127
      %s131 = sphi 0, %s130
      %s147 = sphi 0, %s131
    $region4: #{tpu_custom_call.1} parent=1 // loop_header_branch
      %21 = sbr.rel (%p19) target = $region8
    $region5: #{tpu_custom_call.1} parent=1 // loop_body
      %s23 = ssub.s32 %s18, 1
      %s24 = ssub.s32 %s18, 2
      %s31 = sadd.s32 1, %s26
      %p32 = scmp.ge.s32.totalorder %s31, 2
      %s33 = scalar_select %p32, 0, %s31
      %s34 = sadd.s32 1, %s25
      %s35 = scalar_select %p32, %s34, %s25
      %p36 = scmp.ge.s32.totalorder %s35, 4
      %s37 = scalar_select %p36, 0, %s35
      %s38 = sadd.s32 %s25, 1
      %s39 = sadd.s32 %s37, 1
      %s40 = ssub.s32 %s26, %s33
      %s41 = ssub.s32 %s38, %s39
      %s42 = sor.u32 %s40, %s41
      %p43 = scmp.eq.s32.totalorder %s42, 0
      %s45 = sadd.s32 %s44, 1
      %s46 = scalar_select %p43, %s44, %s45
      %p49 = pneg %p43
      %p50 = scmp.eq.s32.totalorder %s18, 7
      %p51 = por %p49, %p50
      %p52 = scmp.ne.s32.totalorder %s44, %s47
      %p53 = scmp.eq.s32.totalorder %s18, 0
      %p54 = por %p52, %p53
      %p55 = scmp.ne.s32.totalorder %s44, %s47
      %p56 = scmp.eq.s32.totalorder %s23, 7
      %p57 = por %p55, %p56
      %p58 = scmp.ne.s32.totalorder %s47, %s48
      %p59 = scmp.eq.s32.totalorder %s23, 0
      %p60 = por %p58, %p59
      %p61 = scmp.ne.s32.totalorder %s47, %s48
      %p62 = scmp.eq.s32.totalorder %s24, 7
      %p63 = por %p61, %p62
      %p65 = scmp.ne.s32.totalorder %s48, %s64
      %p66 = scmp.eq.s32.totalorder %s24, 0
      %p67 = por %p65, %p66
      %s68 = sadd.s32 %s25, 1
      %s69 = smul.u32 %s68, 2
      %s70 = ssub.s32 %s69, 1
      %s71 = sadd.s32 %s37, 1
      %s72 = smul.u32 %s71, 2
      %s73 = ssub.s32 %s72, 1
      %s74 = ssub.s32 %s26, %s33
      %s75 = ssub.s32 %s70, %s73
      %s76 = sor.u32 %s74, %s75
      %p77 = scmp.eq.s32.totalorder %s76, 0
      %s79 = sadd.s32 %s78, 1
      %s80 = scalar_select %p77, %s78, %s79
      %p83 = pneg %p77
      %p84 = scmp.eq.s32.totalorder %s18, 7
      %p85 = por %p83, %p84
      %p86 = scmp.ne.s32.totalorder %s78, %s81
      %p87 = scmp.eq.s32.totalorder %s18, 0
      %p88 = por %p86, %p87
      %p89 = scmp.ne.s32.totalorder %s78, %s81
      %p90 = scmp.eq.s32.totalorder %s23, 7
      %p91 = por %p89, %p90
      %p92 = scmp.ne.s32.totalorder %s81, %s82
      %p93 = scmp.eq.s32.totalorder %s23, 0
      %p94 = por %p92, %p93
      %p95 = scmp.ne.s32.totalorder %s81, %s82
      %p96 = scmp.eq.s32.totalorder %s24, 7
      %p97 = por %p95, %p96
      %p99 = scmp.ne.s32.totalorder %s82, %s98
      %p100 = scmp.eq.s32.totalorder %s24, 0
      %p101 = por %p99, %p100
      %s103 = sadd.s32 %s102, 1
      %p106 = scmp.eq.s32.totalorder %s18, 7
      %p107 = scmp.ne.s32.totalorder %s102, %s104
      %p108 = scmp.eq.s32.totalorder %s18, 0
      %p109 = por %p107, %p108
      %p110 = scmp.ne.s32.totalorder %s102, %s104
      %p111 = scmp.eq.s32.totalorder %s23, 7
      %p112 = por %p110, %p111
      %p113 = scmp.ne.s32.totalorder %s104, %s105
      %p114 = scmp.eq.s32.totalorder %s23, 0
      %p115 = por %p113, %p114
      %p116 = scmp.ne.s32.totalorder %s104, %s105
      %p117 = scmp.eq.s32.totalorder %s24, 7
      %p118 = por %p116, %p117
      %p120 = scmp.ne.s32.totalorder %s105, %s119
      %p121 = scmp.eq.s32.totalorder %s24, 0
      %p122 = por %p120, %p121
      %s123 = ssub.s32 %s26, %s33
      %s124 = ssub.s32 %s25, %s37
      %s125 = sor.u32 %s123, %s124
      %p126 = scmp.eq.s32.totalorder %s125, 0
      %s128 = sadd.s32 %s127, 1
      %s129 = scalar_select %p126, %s127, %s128
      %p132 = pneg %p126
      %p133 = scmp.eq.s32.totalorder %s18, 7
      %p134 = por %p132, %p133
      %p135 = scmp.ne.s32.totalorder %s127, %s130
      %p136 = scmp.eq.s32.totalorder %s18, 0
      %p137 = por %p135, %p136
      %p138 = scmp.ne.s32.totalorder %s127, %s130
      %p139 = scmp.eq.s32.totalorder %s23, 7
      %p140 = por %p138, %p139
      %p141 = scmp.ne.s32.totalorder %s130, %s131
      %p142 = scmp.eq.s32.totalorder %s23, 0
      %p143 = por %p141, %p142
      %p144 = scmp.ne.s32.totalorder %s130, %s131
      %p145 = scmp.eq.s32.totalorder %s24, 7
      %p146 = por %p144, %p145
      %p148 = scmp.ne.s32.totalorder %s131, %s147
      %p149 = scmp.eq.s32.totalorder %s24, 0
      %p150 = por %p148, %p149
      %p151 = scmp.le.s32.totalorder 1, %s18
      %p152 = scmp.lt.s32.totalorder %s18, 9
      %p153 = pnand %p151, %p152
      %p154 = pneg %p153
      // Predicated region
      $region9: #{tpu_custom_call.1} parent=5 // pred_check
        _
      $region10: #{tpu_custom_call.1} parent=5 // pred_check_branch
        %156 = sbr.rel (%p153) target = $region12
      $region11: #{tpu_custom_call.1} parent=5 // pred_region
        %s157 = ssub.s32 %s18, 1
        // Predicated region
        $region13: #{tpu_custom_call.1} parent=11 // pred_check
          %p158 = pneg %p115
        $region14: #{tpu_custom_call.1} parent=11 // pred_check_branch
          %160 = sbr.rel (%p158) target = $region16
        $region15: #{tpu_custom_call.1} parent=11 // pred_region
          _
        $region16: #{tpu_custom_call.1} parent=11 // pred_fallthru
          _
      $region12: #{tpu_custom_call.1} parent=5 // pred_fallthru
        _
      %p161 = scmp.lt.s32.totalorder %s18, 8
      // Predicated region
      $region17: #{tpu_custom_call.1} parent=5 // pred_check
        %p162 = pneg %p161
      $region18: #{tpu_custom_call.1} parent=5 // pred_check_branch
        %164 = sbr.rel (%p162) target = $region20
      $region19: #{tpu_custom_call.1} parent=5 // pred_region
        // Predicated region
        $region21: #{tpu_custom_call.1} parent=19 // pred_check
          %p165 = pneg %p54
        $region22: #{tpu_custom_call.1} parent=19 // pred_check_branch
          %167 = sbr.rel (%p165) target = $region24
        $region23: #{tpu_custom_call.1} parent=19 // pred_region
          %s168 = sand.u32 %s44, 1
          %s169 = scalar_lea.sflag [#allocation3], %s168
          %s170 = sand.u32 %s44, 1
          %s171 = smul.addr %s170, 8
          %s172 = scalar_lea.vmem [#allocation2], %s171
          %s173 = sadd.s32 %s25, 1
          %s174 = smul.u32 2, %s173
          %176 = vsyncadd %s169, 0
          %s177 = smul.addr %s26, 10
          %s178 = sadd.s32 %s174, %s177
          %s179 = smul.addr %s178, 4
          %s180 = scalar_lea.hbm %s0, %s179
          %s182 = sshll.u32 %s180, 4
          %s183 = int_to_ptr.hbm [resolvable:$true] %s182
          %s184 = sshll.u32 %s172, 4
          %s185 = int_to_ptr.vmem [resolvable:$true] %s184
          %187 = dma.hbm_to_vmem [thread:$0]  %s183, 128, %s185, %s169
        $region24: #{tpu_custom_call.1} parent=19 // pred_fallthru
          _
        // Predicated region
        $region25: #{tpu_custom_call.1} parent=19 // pred_check
          %p188 = pneg %p88
        $region26: #{tpu_custom_call.1} parent=19 // pred_check_branch
          %190 = sbr.rel (%p188) target = $region28
        $region27: #{tpu_custom_call.1} parent=19 // pred_region
          %s191 = sand.u32 %s78, 1
          %s192 = scalar_lea.sflag [#allocation6], %s191
          %s193 = sand.u32 %s78, 1
          %s194 = smul.addr %s193, 4
          %s195 = scalar_lea.vmem [#allocation5], %s194
          %s196 = sadd.s32 %s25, 1
          %s197 = smul.u32 %s196, 2
          %s198 = ssub.s32 %s197, 1
          %200 = vsyncadd %s192, 0
          %s201 = smul.addr %s26, 10
          %s202 = sadd.s32 %s198, %s201
          %s203 = smul.addr %s202, 4
          %s204 = scalar_lea.hbm %s1, %s203
          %s206 = sshll.u32 %s204, 4
          %s207 = int_to_ptr.hbm [resolvable:$true] %s206
          %s208 = sshll.u32 %s195, 4
          %s209 = int_to_ptr.vmem [resolvable:$true] %s208
          %211 = dma.hbm_to_vmem [thread:$0]  %s207, 64, %s209, %s192
        $region28: #{tpu_custom_call.1} parent=19 // pred_fallthru
          _
      $region20: #{tpu_custom_call.1} parent=5 // pred_fallthru
        _
      %p212 = scmp.le.s32.totalorder 1, %s18
      %p213 = scmp.lt.s32.totalorder %s18, 9
      %p214 = pnand %p212, %p213
      %p215 = pneg %p214
      // Predicated region
      $region29: #{tpu_custom_call.1} parent=5 // pred_check
        _
      $region30: #{tpu_custom_call.1} parent=5 // pred_check_branch
        %217 = sbr.rel (%p214) target = $region32
      $region31: #{tpu_custom_call.1} parent=5 // pred_region
        %s218 = ssub.s32 %s18, 1
        %s219 = sand.u32 %s47, 1
        %s220 = scalar_lea.sflag [#allocation3], %s219
        %s221 = sand.u32 %s47, 1
        %s222 = smul.addr %s221, 8
        %s223 = scalar_lea.vmem [#allocation2], %s222
        // Predicated region
        $region33: #{tpu_custom_call.1} parent=31 // pred_check
          %p224 = pneg %p60
        $region34: #{tpu_custom_call.1} parent=31 // pred_check_branch
          %226 = sbr.rel (%p224) target = $region36
        $region35: #{tpu_custom_call.1} parent=31 // pred_region
          %228 = dma.done %s220, 128
        $region36: #{tpu_custom_call.1} parent=31 // pred_fallthru
          _
        %s229 = sand.u32 %s81, 1
        %s230 = scalar_lea.sflag [#allocation6], %s229
        %s231 = sand.u32 %s81, 1
        %s232 = smul.addr %s231, 4
        %s233 = scalar_lea.vmem [#allocation5], %s232
        // Predicated region
        $region37: #{tpu_custom_call.1} parent=31 // pred_check
          %p234 = pneg %p94
        $region38: #{tpu_custom_call.1} parent=31 // pred_check_branch
          %236 = sbr.rel (%p234) target = $region40
        $region39: #{tpu_custom_call.1} parent=31 // pred_region
          %238 = dma.done %s230, 64
        $region40: #{tpu_custom_call.1} parent=31 // pred_fallthru
          _
        %s239 = sand.u32 %s47, 1
        %s240 = scalar_lea.sflag [#allocation3], %s239
        %s241 = sand.u32 %s47, 1
        %s242 = smul.addr %s241, 8
        %s243 = scalar_lea.vmem [#allocation2], %s242
        %p244 = pneg %p60
        %p245 = pneg %p57
        %s246 = sand.u32 %s81, 1
        %s247 = scalar_lea.sflag [#allocation6], %s246
        %s248 = sand.u32 %s81, 1
        %s249 = smul.addr %s248, 4
        %s250 = scalar_lea.vmem [#allocation5], %s249
        %p251 = pneg %p94
        %p252 = pneg %p91
        %p253 = pneg %p115
        %p254 = pneg %p112
        %p255 = pneg %p143
        %p256 = pneg %p140
        %s257 = sand.u32 %s130, 1
        %s258 = scalar_lea.sflag [#allocation4], %s257
        %s259 = sand.u32 %s130, 1
        %s260 = smul.addr %s259, 2
        %s261 = scalar_lea.vmem [#allocation7], %s260
        %s262 = sadd.s32 %s27, 1
        %s263 = smul.u32 2, %s262
        %s264 = sadd.s32 %s27, 1
        %s265 = smul.u32 %s264, 2
        %s266 = ssub.s32 %s265, 1
        %s267 = smul.u32 2, %s27
        %v268 = vld [vmem:[%s223] sm:$0xff]
        %v269 = vld [vmem:[%s233] sm:$0xf]
        %271 = vst [vmem:[#allocation1] ss:$2 sm:$0xff] %v268
        %v272 = vld.sshfl [vmem:[#allocation1] sm:$0xff pattern:$0x75316420]
        %v273 = vld.sshfl [vmem:[#allocation1 + $0x8] sm:$0xff pattern:$0x75316420]
        %v274 = vld [vmem:[%s2] sm:$0x1f]
        %v276 = vrot.slane %v274, 1
        %278 = vrot.lane.b32.xlu0 %v269, 4
        %v279 = vpop.permute.xlu0 %278
        %280 = vrot.lane.b32.xlu0 %v272, 4
        %v281 = vpop.permute.xlu0 %280
        %282 = vrot.lane.b32.xlu0 %v273, 4
        %v283 = vpop.permute.xlu0 %282
        %vm284 = vcmask 31744
        %v285 = vsel %vm284, %v279, %v281
        %v286 = vsel %vm284, %v281, %v283
        %v287 = vsel %vm284, %v276, 0
        %vm289 = vcmask 1043456
        %v290 = vsel %vm289, %v285, 0
        %v292 = vsel %vm289, %v286, 0
        %294 = vmatpush.msra.mxu0 0.0
        %295 = vmatpush.msra.mxu0 0.0
        %296 = vmatpush.msra.mxu0 0.0
        %297 = vmatpush.msra.mxu0 0.0
        %298 = vmatpush.msra.mxu0 0.0
        %299 = vmatpush.msra.mxu0 0.0
        %300 = vmatpush.msra.mxu0 0.0
        %301 = vmatpush.msra.mxu0 0.0
        %302 = vmatpush.msra.mxu0 0.0
        %303 = vmatpush.msra.mxu0 0.0
        %304 = vmatpush.msra.mxu0 0.0
        %305 = vmatpush.msra.mxu0 0.0
        %306 = vmatpush.msra.mxu0 0.0
        %307 = vmatpush.msra.mxu0 0.0
        %308 = vmatpush.msra.mxu0 0.0
        %309 = vmatpush.msra.mxu0 %v290
        %310 = vmatmul.f32.gmra.mxu0 %v287
        %v311 = vpop.f32.mrf.mxu0
        %v312 = vadd.f32 0.0, %v311
        %313 = vdwg.mxu0
        %314 = vmatpush.msra.mxu0 0.0
        %315 = vmatpush.msra.mxu0 0.0
        %316 = vmatpush.msra.mxu0 0.0
        %317 = vmatpush.msra.mxu0 0.0
        %318 = vmatpush.msra.mxu0 0.0
        %319 = vmatpush.msra.mxu0 0.0
        %320 = vmatpush.msra.mxu0 0.0
        %321 = vmatpush.msra.mxu0 0.0
        %322 = vmatpush.msra.mxu0 0.0
        %323 = vmatpush.msra.mxu0 0.0
        %324 = vmatpush.msra.mxu0 0.0
        %325 = vmatpush.msra.mxu0 0.0
        %326 = vmatpush.msra.mxu0 0.0
        %327 = vmatpush.msra.mxu0 0.0
        %328 = vmatpush.msra.mxu0 0.0
        %329 = vmatpush.msra.mxu0 %v292
        %330 = vmatmul.f32.gmra.mxu0 %v287
        %v331 = vpop.f32.mrf.mxu0
        %v332 = vadd.f32 0.0, %v331
        %333 = vdwg.mxu0
        %334 = vst [vmem:[#allocation1] ss:$2 sm:$0xff] %v268
        %v335 = vld.sshfl [vmem:[#allocation1] sm:$0xff pattern:$0x75316420]
        %v336 = vld.sshfl [vmem:[#allocation1 + $0x8] sm:$0xff pattern:$0x75316420]
        %v337 = vsel %vm284, %v274, 0
        %v339 = vsel %vm289, %v335, 0
        %v341 = vsel %vm289, %v336, 0
        %343 = vmatpush.msra.mxu0 0.0
        %344 = vmatpush.msra.mxu0 0.0
        %345 = vmatpush.msra.mxu0 0.0
        %346 = vmatpush.msra.mxu0 0.0
        %347 = vmatpush.msra.mxu0 0.0
        %348 = vmatpush.msra.mxu0 0.0
        %349 = vmatpush.msra.mxu0 0.0
        %350 = vmatpush.msra.mxu0 0.0
        %351 = vmatpush.msra.mxu0 0.0
        %352 = vmatpush.msra.mxu0 0.0
        %353 = vmatpush.msra.mxu0 0.0
        %354 = vmatpush.msra.mxu0 0.0
        %355 = vmatpush.msra.mxu0 0.0
        %356 = vmatpush.msra.mxu0 0.0
        %357 = vmatpush.msra.mxu0 0.0
        %358 = vmatpush.msra.mxu0 %v339
        %359 = vmatmul.f32.gmra.mxu0 %v337
        %v360 = vpop.f32.mrf.mxu0
        %v361 = vadd.f32 %v312, %v360
        %362 = vdwg.mxu0
        %363 = vmatpush.msra.mxu0 0.0
        %364 = vmatpush.msra.mxu0 0.0
        %365 = vmatpush.msra.mxu0 0.0
        %366 = vmatpush.msra.mxu0 0.0
        %367 = vmatpush.msra.mxu0 0.0
        %368 = vmatpush.msra.mxu0 0.0
        %369 = vmatpush.msra.mxu0 0.0
        %370 = vmatpush.msra.mxu0 0.0
        %371 = vmatpush.msra.mxu0 0.0
        %372 = vmatpush.msra.mxu0 0.0
        %373 = vmatpush.msra.mxu0 0.0
        %374 = vmatpush.msra.mxu0 0.0
        %375 = vmatpush.msra.mxu0 0.0
        %376 = vmatpush.msra.mxu0 0.0
        %377 = vmatpush.msra.mxu0 0.0
        %378 = vmatpush.msra.mxu0 %v341
        %379 = vmatmul.f32.gmra.mxu0 %v337
        %v380 = vpop.f32.mrf.mxu0
        %v381 = vadd.f32 %v332, %v380
        %382 = vdwg.mxu0
        %v383 = vrot.slane %v274, 2
        %384 = vrot.lane.b32.xlu0 %v269, 8
        %v385 = vpop.permute.xlu0 %384
        %386 = vrot.lane.b32.xlu0 %v272, 8
        %v387 = vpop.permute.xlu0 %386
        %388 = vrot.lane.b32.xlu0 %v273, 8
        %v389 = vpop.permute.xlu0 %388
        %vm390 = vcmask 64512
        %v391 = vsel %vm390, %v385, %v387
        %v392 = vsel %vm390, %v387, %v389
        %v393 = vsel %vm284, %v383, 0
        %v395 = vsel %vm289, %v391, 0
        %v397 = vsel %vm289, %v392, 0
        %399 = vmatpush.msra.mxu0 0.0
        %400 = vmatpush.msra.mxu0 0.0
        %401 = vmatpush.msra.mxu0 0.0
        %402 = vmatpush.msra.mxu0 0.0
        %403 = vmatpush.msra.mxu0 0.0
        %404 = vmatpush.msra.mxu0 0.0
        %405 = vmatpush.msra.mxu0 0.0
        %406 = vmatpush.msra.mxu0 0.0
        %407 = vmatpush.msra.mxu0 0.0
        %408 = vmatpush.msra.mxu0 0.0
        %409 = vmatpush.msra.mxu0 0.0
        %410 = vmatpush.msra.mxu0 0.0
        %411 = vmatpush.msra.mxu0 0.0
        %412 = vmatpush.msra.mxu0 0.0
        %413 = vmatpush.msra.mxu0 0.0
        %414 = vmatpush.msra.mxu0 %v395
        %415 = vmatmul.f32.gmra.mxu0 %v393
        %v416 = vpop.f32.mrf.mxu0
        %v417 = vadd.f32 0.0, %v416
        %418 = vdwg.mxu0
        %419 = vmatpush.msra.mxu0 0.0
        %420 = vmatpush.msra.mxu0 0.0
        %421 = vmatpush.msra.mxu0 0.0
        %422 = vmatpush.msra.mxu0 0.0
        %423 = vmatpush.msra.mxu0 0.0
        %424 = vmatpush.msra.mxu0 0.0
        %425 = vmatpush.msra.mxu0 0.0
        %426 = vmatpush.msra.mxu0 0.0
        %427 = vmatpush.msra.mxu0 0.0
        %428 = vmatpush.msra.mxu0 0.0
        %429 = vmatpush.msra.mxu0 0.0
        %430 = vmatpush.msra.mxu0 0.0
        %431 = vmatpush.msra.mxu0 0.0
        %432 = vmatpush.msra.mxu0 0.0
        %433 = vmatpush.msra.mxu0 0.0
        %434 = vmatpush.msra.mxu0 %v397
        %435 = vmatmul.f32.gmra.mxu0 %v393
        %v436 = vpop.f32.mrf.mxu0
        %v437 = vadd.f32 0.0, %v436
        %438 = vdwg.mxu0
        %v439 = vadd.f32 %v361, %v417
        %v440 = vadd.f32 %v381, %v437
        %v441 = vrot.slane %v274, 3
        %442 = vrot.lane.b32.xlu0 %v269, 16
        %v443 = vpop.permute.xlu0 %442
        %444 = vrot.lane.b32.xlu0 %v272, 16
        %v445 = vpop.permute.xlu0 %444
        %446 = vrot.lane.b32.xlu0 %v273, 16
        %v447 = vpop.permute.xlu0 %446
        %vm448 = vcmask 130048
        %v449 = vsel %vm448, %v443, %v445
        %v450 = vsel %vm448, %v445, %v447
        %v451 = vsel %vm284, %v441, 0
        %v453 = vsel %vm289, %v449, 0
        %v455 = vsel %vm289, %v450, 0
        %457 = vmatpush.msra.mxu0 0.0
        %458 = vmatpush.msra.mxu0 0.0
        %459 = vmatpush.msra.mxu0 0.0
        %460 = vmatpush.msra.mxu0 0.0
        %461 = vmatpush.msra.mxu0 0.0
        %462 = vmatpush.msra.mxu0 0.0
        %463 = vmatpush.msra.mxu0 0.0
        %464 = vmatpush.msra.mxu0 0.0
        %465 = vmatpush.msra.mxu0 0.0
        %466 = vmatpush.msra.mxu0 0.0
        %467 = vmatpush.msra.mxu0 0.0
        %468 = vmatpush.msra.mxu0 0.0
        %469 = vmatpush.msra.mxu0 0.0
        %470 = vmatpush.msra.mxu0 0.0
        %471 = vmatpush.msra.mxu0 0.0
        %472 = vmatpush.msra.mxu0 %v453
        %473 = vmatmul.f32.gmra.mxu0 %v451
        %v474 = vpop.f32.mrf.mxu0
        %v475 = vadd.f32 0.0, %v474
        %476 = vdwg.mxu0
        %477 = vmatpush.msra.mxu0 0.0
        %478 = vmatpush.msra.mxu0 0.0
        %479 = vmatpush.msra.mxu0 0.0
        %480 = vmatpush.msra.mxu0 0.0
        %481 = vmatpush.msra.mxu0 0.0
        %482 = vmatpush.msra.mxu0 0.0
        %483 = vmatpush.msra.mxu0 0.0
        %484 = vmatpush.msra.mxu0 0.0
        %485 = vmatpush.msra.mxu0 0.0
        %486 = vmatpush.msra.mxu0 0.0
        %487 = vmatpush.msra.mxu0 0.0
        %488 = vmatpush.msra.mxu0 0.0
        %489 = vmatpush.msra.mxu0 0.0
        %490 = vmatpush.msra.mxu0 0.0
        %491 = vmatpush.msra.mxu0 0.0
        %492 = vmatpush.msra.mxu0 %v455
        %493 = vmatmul.f32.gmra.mxu0 %v451
        %v494 = vpop.f32.mrf.mxu0
        %v495 = vadd.f32 0.0, %v494
        %496 = vdwg.mxu0
        %v497 = vadd.f32 %v439, %v475
        %v498 = vadd.f32 %v440, %v495
        %v499 = vrot.slane %v274, 4
        %500 = vrot.lane.b32.xlu0 %v269, 32
        %v501 = vpop.permute.xlu0 %500
        %502 = vrot.lane.b32.xlu0 %v272, 32
        %v503 = vpop.permute.xlu0 %502
        %504 = vrot.lane.b32.xlu0 %v273, 32
        %v505 = vpop.permute.xlu0 %504
        %vm506 = vcmask 261120
        %v507 = vsel %vm506, %v501, %v503
        %v508 = vsel %vm506, %v503, %v505
        %v509 = vsel %vm284, %v499, 0
        %v511 = vsel %vm289, %v507, 0
        %v513 = vsel %vm289, %v508, 0
        %515 = vmatpush.msra.mxu0 0.0
        %516 = vmatpush.msra.mxu0 0.0
        %517 = vmatpush.msra.mxu0 0.0
        %518 = vmatpush.msra.mxu0 0.0
        %519 = vmatpush.msra.mxu0 0.0
        %520 = vmatpush.msra.mxu0 0.0
        %521 = vmatpush.msra.mxu0 0.0
        %522 = vmatpush.msra.mxu0 0.0
        %523 = vmatpush.msra.mxu0 0.0
        %524 = vmatpush.msra.mxu0 0.0
        %525 = vmatpush.msra.mxu0 0.0
        %526 = vmatpush.msra.mxu0 0.0
        %527 = vmatpush.msra.mxu0 0.0
        %528 = vmatpush.msra.mxu0 0.0
        %529 = vmatpush.msra.mxu0 0.0
        %530 = vmatpush.msra.mxu0 %v511
        %531 = vmatmul.f32.gmra.mxu0 %v509
        %v532 = vpop.f32.mrf.mxu0
        %v533 = vadd.f32 0.0, %v532
        %534 = vdwg.mxu0
        %535 = vmatpush.msra.mxu0 0.0
        %536 = vmatpush.msra.mxu0 0.0
        %537 = vmatpush.msra.mxu0 0.0
        %538 = vmatpush.msra.mxu0 0.0
        %539 = vmatpush.msra.mxu0 0.0
        %540 = vmatpush.msra.mxu0 0.0
        %541 = vmatpush.msra.mxu0 0.0
        %542 = vmatpush.msra.mxu0 0.0
        %543 = vmatpush.msra.mxu0 0.0
        %544 = vmatpush.msra.mxu0 0.0
        %545 = vmatpush.msra.mxu0 0.0
        %546 = vmatpush.msra.mxu0 0.0
        %547 = vmatpush.msra.mxu0 0.0
        %548 = vmatpush.msra.mxu0 0.0
        %549 = vmatpush.msra.mxu0 0.0
        %550 = vmatpush.msra.mxu0 %v513
        %551 = vmatmul.f32.gmra.mxu0 %v509
        %v552 = vpop.f32.mrf.mxu0
        %v553 = vadd.f32 0.0, %v552
        %554 = vdwg.mxu0
        %v555 = vadd.f32 %v497, %v533
        %v556 = vadd.f32 %v498, %v553
        %v559 = vrot.slane %v556, 7
        %vm560 = vcmask 1040384
        %v561 = vsel %vm560, %v555, %v559
        %v563 = vlaneseq
        %vm564 = vcmp.ge.s32.totalorder %v563, 0
        %vm565 = vcmp.lt.s32.totalorder %v563, 256
        %vm566 = vmand %vm564, %vm565
        %567 = vst.msk [vmem:[%s261] sm:$0x3] %vm566, %v561
        %s568 = sand.u32 %s130, 1
        %s569 = scalar_lea.sflag [#allocation4], %s568
        %s570 = sand.u32 %s130, 1
        %s571 = smul.addr %s570, 2
        %s572 = scalar_lea.vmem [#allocation7], %s571
        // Predicated region
        $region41: #{tpu_custom_call.1} parent=31 // pred_check
          %p573 = pneg %p140
        $region42: #{tpu_custom_call.1} parent=31 // pred_check_branch
          %575 = sbr.rel (%p573) target = $region44
        $region43: #{tpu_custom_call.1} parent=31 // pred_region
          %s576 = smul.u32 2, %s27
          %578 = vsyncadd %s569, 0
          %s579 = smul.addr %s28, 8
          %s580 = sadd.s32 %s576, %s579
          %s581 = scalar_lea.hbm %s3, %s580
          %s583 = sshll.u32 %s572, 4
          %s584 = int_to_ptr.vmem [resolvable:$true] %s583
          %s585 = sshll.u32 %s581, 4
          %s586 = int_to_ptr.hbm [resolvable:$true] %s585
          %588 = dma.vmem_to_hbm [thread:$0]  %s584, 32, %s586, %s569
        $region44: #{tpu_custom_call.1} parent=31 // pred_fallthru
          _
      $region32: #{tpu_custom_call.1} parent=5 // pred_fallthru
        _
      %p589 = scmp.le.s32.totalorder 2, %s18
      // Predicated region
      $region45: #{tpu_custom_call.1} parent=5 // pred_check
        %p590 = pneg %p589
      $region46: #{tpu_custom_call.1} parent=5 // pred_check_branch
        %592 = sbr.rel (%p590) target = $region48
      $region47: #{tpu_custom_call.1} parent=5 // pred_region
        %s593 = ssub.s32 %s18, 2
        // Predicated region
        $region49: #{tpu_custom_call.1} parent=47 // pred_check
          %p594 = pneg %p146
        $region50: #{tpu_custom_call.1} parent=47 // pred_check_branch
          %596 = sbr.rel (%p594) target = $region52
        $region51: #{tpu_custom_call.1} parent=47 // pred_region
          %s597 = sand.u32 %s131, 1
          %s598 = scalar_lea.sflag [#allocation4], %s597
          %s599 = sand.u32 %s131, 1
          %s600 = smul.addr %s599, 2
          %s601 = scalar_lea.vmem [#allocation7], %s600
          %603 = dma.done %s598, 32
        $region52: #{tpu_custom_call.1} parent=47 // pred_fallthru
          _
      $region48: #{tpu_custom_call.1} parent=5 // pred_fallthru
        _
    $region6: #{tpu_custom_call.1} parent=1 // loop_footer
      %s22 = sadd.s32 1, %s18
    $region7: #{tpu_custom_call.1} parent=1 // loop_footer_branch
      %17 = sbr.rel target = $region3
    $region8: #{tpu_custom_call.1} parent=1 // loop_exit
      _
    %604 = vsyncpa [#allocation3], 1
    %s605 = scalar_lea.sflag [#allocation3], 1
    %606 = vsyncpa %s605, 1
    %607 = vsyncpa [#allocation6], 1
    %s608 = scalar_lea.sflag [#allocation6], 1
    %609 = vsyncpa %s608, 1
    %610 = vsyncpa [#allocation4], 1
    %s611 = scalar_lea.sflag [#allocation4], 1
    %612 = vsyncpa %s611, 1

</llo_original>
